<compile_context>
chip_gen: v6e
topology: v6e:2x2x1
jax: 0.10.0
libtpu: 0.0.40
codegen_flags: <defaults>
</compile_context>

<pallas_src>
import math
import functools

import jax
import jax.numpy as jnp
from jax import lax
from jax.experimental import pallas as pl
from jax.experimental.pallas import tpu as pltpu


# ---------------------------------------------------------------------------
# helpers
# ---------------------------------------------------------------------------

def _vmem_limit_bytes(frac=0.75, fallback=48 * 1024 * 1024):
    """~75% of the chip's VMEM (v5e/v6e: ~96 MiB, v7x: ~48 MiB).  Falls back to
    a conservative 48 MiB when the hardware query is unavailable (e.g. when
    running under the interpreter)."""
    try:
        return int(pltpu.get_tpu_info().vmem_capacity_bytes * frac)
    except Exception:
        return fallback


def _invariant_spec(block_shape, index_map):
    """BlockSpec for a grid-invariant operand: single-buffered so the pipeline
    does not allocate 2x VMEM for data whose block index never changes."""
    try:
        return pl.BlockSpec(block_shape, index_map, pipeline_mode=pl.Buffered(1))
    except Exception:  # older jax without pipeline_mode / Buffered
        return pl.BlockSpec(block_shape, index_map)


# ---------------------------------------------------------------------------
# kernel 1: fused QKV projection   qkv = x @ [Wq | Wk | Wv] + [bq | bk | bv]
# ---------------------------------------------------------------------------

def _qkv_proj_kernel(x_ref, w_ref, b_ref, o_ref):
    # x block: (1, tm, C); w block: (C, tn); b block: (1, tn); out: (1, tm, tn)
    acc = jnp.dot(x_ref[0], w_ref[...], preferred_element_type=jnp.float32)
    o_ref[0] = (acc + b_ref[...]).astype(o_ref.dtype)


# ---------------------------------------------------------------------------
# kernel 2: flash-style attention over the (B, T, 3C) slab + fused output proj
# ---------------------------------------------------------------------------

def _flash_attn_kernel(q_ref, k_ref, v_ref, wp_ref, bp_ref, o_ref,
                       m_s, l_s, acc_s, *, scale, num_head, head_dim):
    # q block: (1, tq, C) — lanes [0, C) of the slab
    # k block: (1, tk, C) — lanes [C, 2C)
    # v block: (1, tk, C) — lanes [2C, 3C)
    # wp: (C, C); bp: (1, C); out block: (1, tq, C)
    ki = pl.program_id(2)

    @pl.when(ki == 0)
    def _init():
        m_s[...] = jnp.full(m_s.shape, -jnp.inf, dtype=m_s.dtype)
        l_s[...] = jnp.zeros(l_s.shape, dtype=l_s.dtype)
        acc_s[...] = jnp.zeros(acc_s.shape, dtype=acc_s.dtype)

    # Fold the softmax scale into q (tq*C elements) instead of the scores
    # (H*tq*tk elements).  Weak-typed Python scalar keeps the input dtype.
    q = q_ref[0] * scale      # (tq, C)
    k = k_ref[0]              # (tk, C)
    v = v_ref[0]              # (tk, C)

    # Per-head online softmax.  Heads live side-by-side in the lane dimension,
    # so every slice below is a *static* lane window — no transpose / relayout.
    for h in range(num_head):
        sl = slice(h * head_dim, (h + 1) * head_dim)
        q_h = q[:, sl]        # (tq, hd)
        k_h = k[:, sl]        # (tk, hd)
        v_h = v[:, sl]        # (tk, hd)

        # q_h @ k_h^T without an explicit transpose (contract last dims).
        s = lax.dot_general(q_h, k_h, (((1,), (1,)), ((), ())),
                            preferred_element_type=jnp.float32)       # (tq, tk)

        m_prev = m_s[h]                                               # (tq, 1)
        m_new = jnp.maximum(m_prev, s.max(axis=-1, keepdims=True))
        alpha = jnp.exp(m_prev - m_new)
        p = jnp.exp(s - m_new)                                        # (tq, tk) f32
        # Row sums stay in f32 (exactness of the denominator); p is cast to the
        # MXU input dtype (bf16 path) only for the PV matmul.
        l_s[h] = alpha * l_s[h] + p.sum(axis=-1, keepdims=True)
        acc_s[h] = alpha * acc_s[h] + jnp.dot(
            p.astype(v_h.dtype), v_h, preferred_element_type=jnp.float32)
        m_s[h] = m_new

    @pl.when(ki == pl.num_programs(2) - 1)
    def _finalize():
        # Exact deferred softmax normalisation (tiny (tq, 1) tensors per head).
        ys = []
        for h in range(num_head):
            inv = 1.0 / l_s[h]
            ys.append(acc_s[h] * inv)
        # Assemble the (tq, C) head-concat once per q-tile, then run ONE
        # full-depth (K = C) output-projection matmul on the MXU.
        y = jnp.concatenate(ys, axis=-1).astype(wp_ref.dtype)          # (tq, C)
        out = jnp.dot(y, wp_ref[...], preferred_element_type=jnp.float32) + bp_ref[...]
        o_ref[0] = out.astype(o_ref.dtype)


# ---------------------------------------------------------------------------
# wrapper
# ---------------------------------------------------------------------------

def causal_self_attention(x, params, num_head, *,
                          tile_m=256, tile_q=256, tile_k=256, tile_n=1536):
    """x: (B, T, C).  params: pre-transposed (in, out) weights + (1, out) biases.

    Default 256-wide tiles match the 256x256 MXU on v6e/v7x; on v5e pass
    tile_m=tile_q=tile_k=128 (its MXU is 4x128x128).
    """
    B, T, C = x.shape
    H = num_head
    assert C % H == 0
    hd = C // H
    # Per-head lane windows of the fused (B, T, 3C) slab require the C boundary
    # to sit on a 128-lane multiple (true for realistic model widths).
    assert C % 128 == 0, "feature_dim must be a multiple of 128 for this kernel"
    scale = 1.0 / math.sqrt(hd)

    tm = min(tile_m, T)
    tq = min(tile_q, T)
    tk = min(tile_k, T)
    # TODO(synk): for T not divisible by the tile sizes, pad T and mask padded
    # key columns to -inf before the online softmax (padded queries are benign,
    # padded keys are not).
    assert T % tm == 0 and T % tq == 0 and T % tk == 0

    three_c = 3 * C
    # N-tile kernel 1 so the resident weight block stays small (v7x: 64 MiB VMEM).
    if three_c <= tile_n:
        tn = three_c
    else:
        start = max(128, (tile_n // 128) * 128)
        tn = next((n for n in range(start, 0, -128) if three_c % n == 0), three_c)
    # TODO(synk): for very large C, also K-tile kernel 1 with an f32 accumulator.

    dtype = x.dtype
    itemsize = jnp.dtype(dtype).itemsize
    vmem_limit = _vmem_limit_bytes()

    # ---- kernel 1: fused QKV projection -> (B, T, 3C) slab -------------------
    w_qkv = jnp.concatenate([params["wq"], params["wk"], params["wv"]], axis=1)  # (C, 3C)
    b_qkv = jnp.concatenate([params["bq"], params["bk"], params["bv"]], axis=1)  # (1, 3C)

    if tn == three_c:
        # Weight block never changes across the grid -> single-buffer it.
        w_spec = _invariant_spec((C, tn), lambda b, i, n: (0, n))
        b_spec = _invariant_spec((1, tn), lambda b, i, n: (0, n))
    else:
        # Weight block varies along the n axis -> keep default double buffering.
        w_spec = pl.BlockSpec((C, tn), lambda b, i, n: (0, n))
        b_spec = pl.BlockSpec((1, tn), lambda b, i, n: (0, n))

    qkv = pl.pallas_call(
        _qkv_proj_kernel,
        out_shape=jax.ShapeDtypeStruct((B, T, three_c), dtype),
        grid_spec=pltpu.PrefetchScalarGridSpec(
            num_scalar_prefetch=0,
            grid=(B, T // tm, three_c // tn),
            in_specs=[
                pl.BlockSpec((1, tm, C), lambda b, i, n: (b, i, 0)),
                w_spec,
                b_spec,
            ],
            out_specs=pl.BlockSpec((1, tm, tn), lambda b, i, n: (b, i, n)),
        ),
        compiler_params=pltpu.CompilerParams(
            dimension_semantics=("parallel", "parallel", "parallel"),
            vmem_limit_bytes=vmem_limit),
        cost_estimate=pl.CostEstimate(
            flops=2 * B * T * C * three_c,
            transcendentals=0,
            bytes_accessed=(B * T * C + C * three_c + three_c
                            + B * T * three_c) * itemsize),
    )(x, w_qkv, b_qkv)

    # ---- kernel 2: flash attention directly on the slab + fused projection ---
    # q / k / v are three lane-windows of the SAME (B, T, 3C) slab: the last-dim
    # *block* index (0 / 1 / 2) selects q / k / v — no XLA reshape/transpose
    # relayout of the slab is ever materialised between the two pallas_calls.
    kernel = functools.partial(_flash_attn_kernel, scale=scale,
                               num_head=H, head_dim=hd)

    n_q_tiles = T // tq
    out = pl.pallas_call(
        kernel,
        out_shape=jax.ShapeDtypeStruct((B, T, C), dtype),
        grid_spec=pltpu.PrefetchScalarGridSpec(
            num_scalar_prefetch=0,
            grid=(B, n_q_tiles, T // tk),
            in_specs=[
                pl.BlockSpec((1, tq, C), lambda b, qi, ki: (b, qi, 0)),   # q
                pl.BlockSpec((1, tk, C), lambda b, qi, ki: (b, ki, 1)),   # k
                pl.BlockSpec((1, tk, C), lambda b, qi, ki: (b, ki, 2)),   # v
                _invariant_spec((C, C), lambda b, qi, ki: (0, 0)),        # wp
                _invariant_spec((1, C), lambda b, qi, ki: (0, 0)),        # bp
            ],
            out_specs=pl.BlockSpec((1, tq, C), lambda b, qi, ki: (b, qi, 0)),
            scratch_shapes=[
                pltpu.VMEM((H, tq, 1), jnp.float32),    # running max m
                pltpu.VMEM((H, tq, 1), jnp.float32),    # running sum l
                pltpu.VMEM((H, tq, hd), jnp.float32),   # unnormalised accumulator
            ],
        ),
        compiler_params=pltpu.CompilerParams(
            dimension_semantics=("parallel", "parallel", "arbitrary"),
            vmem_limit_bytes=vmem_limit),
        cost_estimate=pl.CostEstimate(
            flops=4 * B * T * T * C + 2 * B * T * C * C,
            transcendentals=B * H * T * T,
            bytes_accessed=(B * T * C * (1 + 2 * n_q_tiles)   # q once, k/v per q-tile
                            + C * C + C + B * T * C) * itemsize),
    )(qkv, qkv, qkv, params["wp"], params["bp"])
    return out


# ---------------------------------------------------------------------------
# pure-JAX reference (mirrors the PyTorch forward; dropout = identity)
# ---------------------------------------------------------------------------

def _reference(x, params, num_head):
    B, T, C = x.shape
    hd = C // num_head
    q = x @ params["wq"] + params["bq"][0]
    k = x @ params["wk"] + params["bk"][0]
    v = x @ params["wv"] + params["bv"][0]
    q = q.reshape(B, T, num_head, hd).transpose(0, 2, 1, 3)
    k = k.reshape(B, T, num_head, hd).transpose(0, 2, 1, 3)
    v = v.reshape(B, T, num_head, hd).transpose(0, 2, 1, 3)
    att = jnp.einsum("bhqd,bhkd->bhqk", q, k) / math.sqrt(hd)
    att = jax.nn.softmax(att, axis=-1)
    y = jnp.einsum("bhqk,bhkd->bhqd", att, v)
    y = y.transpose(0, 2, 1, 3).reshape(B, T, C)
    return y @ params["wp"] + params["bp"][0]


if __name__ == "__main__":
    # Small shapes consistent with the module: (B, T, C), C % num_head == 0.
    # C must be a multiple of 128 for the lane-sliced slab blocks.
    B, T, C = 2, 32, 128
    num_head = 4

    key = jax.random.PRNGKey(0)
    keys = jax.random.split(key, 9)
    wscale = 0.05
    params = {
        "wq": wscale * jax.random.normal(keys[0], (C, C), jnp.float32),
        "bq": wscale * jax.random.normal(keys[1], (1, C), jnp.float32),
        "wk": wscale * jax.random.normal(keys[2], (C, C), jnp.float32),
        "bk": wscale * jax.random.normal(keys[3], (1, C), jnp.float32),
        "wv": wscale * jax.random.normal(keys[4], (C, C), jnp.float32),
        "bv": wscale * jax.random.normal(keys[5], (1, C), jnp.float32),
        "wp": wscale * jax.random.normal(keys[6], (C, C), jnp.float32),
        "bp": wscale * jax.random.normal(keys[7], (1, C), jnp.float32),
    }
    x = jax.random.normal(keys[8], (B, T, C), jnp.float32)
    ref = _reference(x, params, num_head)

    # f32 path with small tiles: exercises the multi-k-tile online softmax and
    # the N-tiled QKV projection.  Exact reciprocal -> tight tolerance is safe.
    out = causal_self_attention(x, params, num_head,
                                tile_m=16, tile_q=16, tile_k=8, tile_n=128)
    out = jax.block_until_ready(out)
    assert out.shape == (B, T, C)
    max_err = float(jnp.max(jnp.abs(out - ref)))
    assert jnp.allclose(out, ref, atol=1e-3, rtol=1e-3), \
        f"mismatch vs JAX reference (f32), max abs err={max_err}"

    # bf16 path with default (single-tile here) tiles: MXU-native inputs with
    # f32 accumulation; loose tolerance covers bf16 rounding.
    params_bf16 = {kk: vv.astype(jnp.bfloat16) for kk, vv in params.items()}
    out_bf16 = causal_self_attention(x.astype(jnp.bfloat16), params_bf16, num_head)
    out_bf16 = jax.block_until_ready(out_bf16)
    assert out_bf16.shape == (B, T, C)
    assert jnp.allclose(out_bf16.astype(jnp.float32), ref, atol=1e-1, rtol=1e-1), \
        "mismatch vs JAX reference (bf16)"

    print("KERNEL_OK")
</pallas_src>

<mosaic_0001>
module attributes {stable_mosaic.version = 11 : i64} {
  func.func @_qkv_proj_kernel(%arg0: i32, %arg1: i32, %arg2: i32, %arg3: memref<1x16x128xf32, #tpu.memory_space<vmem>>, %arg4: memref<128x128xf32, #tpu.memory_space<vmem>>, %arg5: memref<1x128xf32, #tpu.memory_space<vmem>>, %arg6: memref<1x16x128xf32, #tpu.memory_space<vmem>>) attributes {dimension_semantics = [#tpu.dimension_semantics<parallel>, #tpu.dimension_semantics<parallel>, #tpu.dimension_semantics<parallel>], iteration_bounds = array<i64: 2, 2, 3>, scalar_prefetch = 0 : i64, scratch_operands = 0 : i64, tpu.core_type = #tpu.core_type<tc>, window_params = [{transform_indices = @transform_0, window_bounds = array<i64: 1, 16, 128>}, {transform_indices = @transform_1, window_bounds = array<i64: 128, 128>}, {transform_indices = @transform_2, window_bounds = array<i64: 1, 128>}, {transform_indices = @transform_3, window_bounds = array<i64: 1, 16, 128>}]} {
    %c0 = arith.constant 0 : index
    %c0_0 = arith.constant 0 : index
    %c0_1 = arith.constant 0 : index
    %0 = vector.load %arg3[%c0, %c0_0, %c0_1] : memref<1x16x128xf32, #tpu.memory_space<vmem>>, vector<1x16x128xf32>
    %1 = vector.shape_cast %0 : vector<1x16x128xf32> to vector<16x128xf32>
    %c0_2 = arith.constant 0 : index
    %c0_3 = arith.constant 0 : index
    %2 = vector.load %arg4[%c0_2, %c0_3] : memref<128x128xf32, #tpu.memory_space<vmem>>, vector<128x128xf32>
    %cst = arith.constant dense<0.000000e+00> : vector<16x128xf32>
    %3 = tpu.matmul %1, %2, %cst {dimension_numbers = #tpu.dot_dimension_numbers<[1], [0], [0], [1], [0, 0, 1, 1], [], []>} : vector<16x128xf32>, vector<128x128xf32>, vector<16x128xf32> -> vector<16x128xf32>
    %c0_4 = arith.constant 0 : index
    %c0_5 = arith.constant 0 : index
    %4 = vector.load %arg5[%c0_4, %c0_5] : memref<1x128xf32, #tpu.memory_space<vmem>>, vector<1x128xf32>
    %5 = vector.broadcast %4 : vector<1x128xf32> to vector<16x128xf32>
    %6 = arith.addf %3, %5 : vector<16x128xf32>
    %c0_6 = arith.constant 0 : index
    %c0_7 = arith.constant 0 : index
    %c0_8 = arith.constant 0 : index
    %7 = vector.load %arg6[%c0_6, %c0_7, %c0_8] : memref<1x16x128xf32, #tpu.memory_space<vmem>>, vector<1x16x128xf32>
    %8 = vector.shape_cast %7 : vector<1x16x128xf32> to vector<16x128xf32>
    %9 = vector.shape_cast %6 : vector<16x128xf32> to vector<1x16x128xf32>
    tpu.vector_store %arg6[%c0_6, %c0_7, %c0_8], %9 {strides = array<i32>} : memref<1x16x128xf32, #tpu.memory_space<vmem>>, vector<1x16x128xf32>,
    return
  }
  func.func @transform_0(%arg0: i32, %arg1: i32, %arg2: i32) -> (i32, i32, i32) {
    %c0_i32 = arith.constant 0 : i32
    %c0_i32_0 = arith.constant 0 : i32
    return %arg0, %arg1, %c0_i32 : i32, i32, i32
  }
  func.func @transform_1(%arg0: i32, %arg1: i32, %arg2: i32) -> (i32, i32) {
    %c0_i32 = arith.constant 0 : i32
    %c0_i32_0 = arith.constant 0 : i32
    return %c0_i32, %arg2 : i32, i32
  }
  func.func @transform_2(%arg0: i32, %arg1: i32, %arg2: i32) -> (i32, i32) {
    %c0_i32 = arith.constant 0 : i32
    %c0_i32_0 = arith.constant 0 : i32
    return %c0_i32, %arg2 : i32, i32
  }
  func.func @transform_3(%arg0: i32, %arg1: i32, %arg2: i32) -> (i32, i32, i32) {
    %c0_i32 = arith.constant 0 : i32
    return %arg0, %arg1, %arg2 : i32, i32, i32
  }
}

</mosaic_0001>

<llo_original>
// kernel: tpu_custom_call.1
$region0: #{tpu_custom_call.1}
  #allocation0 [shape = 'u32[]', space=smem, size = 0x4, offset = 0x4, fixed_abs, tag = 'smem constant byte address 0x4 - core index']
  #allocation1 [shape = 'u32[144,128]{1,0:T(1,128)}', space=vmem, size = 0x12000, scoped, tag = 'internal scratch']
  %s0 = inlined_call_operand.hbm [shape: f32[2,32,128], index: 0, kind: input, shape index: {}]
  %s1 = inlined_call_operand.hbm [shape: f32[128,384], index: 1, kind: input, shape index: {}]
  %s2 = inlined_call_operand.vmem [shape: f32[1,384], index: 2, kind: input, shape index: {}]
  %s3 = inlined_call_operand.hbm [shape: f32[2,32,384], index: 3, kind: output, shape index: {}]
  %s4 = sld [smem:[#allocation0]]
  $region53: #{tpu_custom_call.1} parent=0
    _
  %s6 = ssub.s32 1, %s4
  %s7 = scalar_select 0, %s6, %s4
  $region1: #{tpu_custom_call.1} parent=0
    #allocation2 [shape = 'u8[16384]{0}', space=vmem, size = 0x4000, scoped, tag = 'input window, operand 0']
    #allocation3 [shape = 's32[2]{0}', space=sflag, size = 0x8, scoped, tag = 'scoped memory for tpu_custom_call.1']
    #allocation4 [shape = 's32[2]{0}', space=sflag, size = 0x8, scoped, tag = 'scoped memory for tpu_custom_call.1']
    #allocation5 [shape = 'u8[131072]{0}', space=vmem, size = 0x20000, scoped, tag = 'input window, operand 1']
    #allocation6 [shape = 's32[2]{0}', space=sflag, size = 0x8, scoped, tag = 'scoped memory for tpu_custom_call.1']
    #allocation7 [shape = 'u8[16384]{0}', space=vmem, size = 0x4000, scoped, tag = 'output window, operand 0']
    %8 = vsyncpa [#allocation3], 0
    %s9 = scalar_lea.sflag [#allocation3], 1
    %10 = vsyncpa %s9, 0
    %11 = vsyncpa [#allocation6], 0
    %s12 = scalar_lea.sflag [#allocation6], 1
    %13 = vsyncpa %s12, 0
    %14 = vsyncpa [#allocation4], 0
    %s15 = scalar_lea.sflag [#allocation4], 1
    %16 = vsyncpa %s15, 0
    loop: start=0, step=1, limit=14
    $region2: #{tpu_custom_call.1} parent=1 // loop_pre_header
      _
    $region3: #{tpu_custom_call.1} parent=1 // loop_header
      %s18 = sphi 0, %s22
      %p19 = scmp.ge.s32.totalorder %s18, 14
      %s25 = sphi 0, %s44
      %s26 = sphi 0, %s40
      %s27 = sphi 0, %s36
      %s28 = sphi 0, %s25
      %s29 = sphi 0, %s26
      %s30 = sphi 0, %s27
      %s31 = sphi 0, %s28
      %s32 = sphi 0, %s29
      %s33 = sphi 0, %s30
      %s49 = sphi 0, %s51
      %s52 = sphi 0, %s49
      %s53 = sphi 0, %s52
      %s69 = sphi 0, %s53
      %s75 = sphi 0, %s77
      %s78 = sphi 0, %s75
      %s79 = sphi 0, %s78
      %s95 = sphi 0, %s79
      %s101 = sphi 0, %s103
      %s104 = sphi 0, %s101
      %s105 = sphi 0, %s104
      %s121 = sphi 0, %s105
      %s131 = sphi 0, %s133
      %s134 = sphi 0, %s131
      %s135 = sphi 0, %s134
      %s151 = sphi 0, %s135
    $region4: #{tpu_custom_call.1} parent=1 // loop_header_branch
      %21 = sbr.rel (%p19) target = $region8
    $region5: #{tpu_custom_call.1} parent=1 // loop_body
      %s23 = ssub.s32 %s18, 1
      %s24 = ssub.s32 %s18, 2
      %s34 = sadd.s32 1, %s27
      %p35 = scmp.ge.s32.totalorder %s34, 3
      %s36 = scalar_select %p35, 0, %s34
      %s37 = sadd.s32 1, %s26
      %s38 = scalar_select %p35, %s37, %s26
      %p39 = scmp.ge.s32.totalorder %s38, 2
      %s40 = scalar_select %p39, 0, %s38
      %s41 = sadd.s32 1, %s25
      %s42 = scalar_select %p39, %s41, %s25
      %p43 = scmp.ge.s32.totalorder %s42, 2
      %s44 = scalar_select %p43, 0, %s42
      %s45 = ssub.s32 %s25, %s44
      %s46 = ssub.s32 %s26, %s40
      %s47 = sor.u32 %s45, %s46
      %p48 = scmp.eq.s32.totalorder %s47, 0
      %s50 = sadd.s32 %s49, 1
      %s51 = scalar_select %p48, %s49, %s50
      %p54 = pneg %p48
      %p55 = scmp.eq.s32.totalorder %s18, 11
      %p56 = por %p54, %p55
      %p57 = scmp.ne.s32.totalorder %s49, %s52
      %p58 = scmp.eq.s32.totalorder %s18, 0
      %p59 = por %p57, %p58
      %p60 = scmp.ne.s32.totalorder %s49, %s52
      %p61 = scmp.eq.s32.totalorder %s23, 11
      %p62 = por %p60, %p61
      %p63 = scmp.ne.s32.totalorder %s52, %s53
      %p64 = scmp.eq.s32.totalorder %s23, 0
      %p65 = por %p63, %p64
      %p66 = scmp.ne.s32.totalorder %s52, %s53
      %p67 = scmp.eq.s32.totalorder %s24, 11
      %p68 = por %p66, %p67
      %p70 = scmp.ne.s32.totalorder %s53, %s69
      %p71 = scmp.eq.s32.totalorder %s24, 0
      %p72 = por %p70, %p71
      %s73 = ssub.s32 %s27, %s36
      %p74 = scmp.eq.s32.totalorder %s73, 0
      %s76 = sadd.s32 %s75, 1
      %s77 = scalar_select %p74, %s75, %s76
      %p80 = pneg %p74
      %p81 = scmp.eq.s32.totalorder %s18, 11
      %p82 = por %p80, %p81
      %p83 = scmp.ne.s32.totalorder %s75, %s78
      %p84 = scmp.eq.s32.totalorder %s18, 0
      %p85 = por %p83, %p84
      %p86 = scmp.ne.s32.totalorder %s75, %s78
      %p87 = scmp.eq.s32.totalorder %s23, 11
      %p88 = por %p86, %p87
      %p89 = scmp.ne.s32.totalorder %s78, %s79
      %p90 = scmp.eq.s32.totalorder %s23, 0
      %p91 = por %p89, %p90
      %p92 = scmp.ne.s32.totalorder %s78, %s79
      %p93 = scmp.eq.s32.totalorder %s24, 11
      %p94 = por %p92, %p93
      %p96 = scmp.ne.s32.totalorder %s79, %s95
      %p97 = scmp.eq.s32.totalorder %s24, 0
      %p98 = por %p96, %p97
      %s99 = ssub.s32 %s27, %s36
      %p100 = scmp.eq.s32.totalorder %s99, 0
      %s102 = sadd.s32 %s101, 1
      %s103 = scalar_select %p100, %s101, %s102
      %p106 = pneg %p100
      %p107 = scmp.eq.s32.totalorder %s18, 11
      %p108 = por %p106, %p107
      %p109 = scmp.ne.s32.totalorder %s101, %s104
      %p110 = scmp.eq.s32.totalorder %s18, 0
      %p111 = por %p109, %p110
      %p112 = scmp.ne.s32.totalorder %s101, %s104
      %p113 = scmp.eq.s32.totalorder %s23, 11
      %p114 = por %p112, %p113
      %p115 = scmp.ne.s32.totalorder %s104, %s105
      %p116 = scmp.eq.s32.totalorder %s23, 0
      %p117 = por %p115, %p116
      %p118 = scmp.ne.s32.totalorder %s104, %s105
      %p119 = scmp.eq.s32.totalorder %s24, 11
      %p120 = por %p118, %p119
      %p122 = scmp.ne.s32.totalorder %s105, %s121
      %p123 = scmp.eq.s32.totalorder %s24, 0
      %p124 = por %p122, %p123
      %s125 = ssub.s32 %s25, %s44
      %s126 = ssub.s32 %s26, %s40
      %s127 = sor.u32 %s125, %s126
      %s128 = ssub.s32 %s27, %s36
      %s129 = sor.u32 %s127, %s128
      %p130 = scmp.eq.s32.totalorder %s129, 0
      %s132 = sadd.s32 %s131, 1
      %s133 = scalar_select %p130, %s131, %s132
      %p136 = pneg %p130
      %p137 = scmp.eq.s32.totalorder %s18, 11
      %p138 = por %p136, %p137
      %p139 = scmp.ne.s32.totalorder %s131, %s134
      %p140 = scmp.eq.s32.totalorder %s18, 0
      %p141 = por %p139, %p140
      %p142 = scmp.ne.s32.totalorder %s131, %s134
      %p143 = scmp.eq.s32.totalorder %s23, 11
      %p144 = por %p142, %p143
      %p145 = scmp.ne.s32.totalorder %s134, %s135
      %p146 = scmp.eq.s32.totalorder %s23, 0
      %p147 = por %p145, %p146
      %p148 = scmp.ne.s32.totalorder %s134, %s135
      %p149 = scmp.eq.s32.totalorder %s24, 11
      %p150 = por %p148, %p149
      %p152 = scmp.ne.s32.totalorder %s135, %s151
      %p153 = scmp.eq.s32.totalorder %s24, 0
      %p154 = por %p152, %p153
      %p155 = scmp.le.s32.totalorder 1, %s18
      %p156 = scmp.lt.s32.totalorder %s18, 13
      %p157 = pnand %p155, %p156
      %p158 = pneg %p157
      // Predicated region
      $region9: #{tpu_custom_call.1} parent=5 // pred_check
        _
      $region10: #{tpu_custom_call.1} parent=5 // pred_check_branch
        %160 = sbr.rel (%p157) target = $region12
      $region11: #{tpu_custom_call.1} parent=5 // pred_region
        %s161 = ssub.s32 %s18, 1
      $region12: #{tpu_custom_call.1} parent=5 // pred_fallthru
        _
      %p162 = scmp.lt.s32.totalorder %s18, 12
      // Predicated region
      $region13: #{tpu_custom_call.1} parent=5 // pred_check
        %p163 = pneg %p162
      $region14: #{tpu_custom_call.1} parent=5 // pred_check_branch
        %165 = sbr.rel (%p163) target = $region16
      $region15: #{tpu_custom_call.1} parent=5 // pred_region
        // Predicated region
        $region17: #{tpu_custom_call.1} parent=15 // pred_check
          %p166 = pneg %p59
        $region18: #{tpu_custom_call.1} parent=15 // pred_check_branch
          %168 = sbr.rel (%p166) target = $region20
        $region19: #{tpu_custom_call.1} parent=15 // pred_region
          %s169 = sand.u32 %s49, 1
          %s170 = scalar_lea.sflag [#allocation3], %s169
          %s171 = sand.u32 %s49, 1
          %s172 = smul.addr %s171, 16
          %s173 = scalar_lea.vmem [#allocation2], %s172
          %s174 = smul.u32 2, %s26
          %s176 = ssub.s32 256, 256
          %177 = vsyncadd %s170, %s176
          %s178 = smul.addr %s25, 4
          %s179 = sadd.s32 %s174, %s178
          %s180 = smul.addr %s179, 128
          %s181 = scalar_lea.hbm %s0, %s180
          %s182 = sshll.u32 %s173, 4
          %s183 = int_to_ptr.vmem [resolvable:$true] %s182
          %188 = dma.hbm_to_vmem [thread:$0]  %s181, 256, %s183, %s170, 128, 128, 8
        $region20: #{tpu_custom_call.1} parent=15 // pred_fallthru
          _
        // Predicated region
        $region21: #{tpu_custom_call.1} parent=15 // pred_check
          %p189 = pneg %p85
        $region22: #{tpu_custom_call.1} parent=15 // pred_check_branch
          %191 = sbr.rel (%p189) target = $region24
        $region23: #{tpu_custom_call.1} parent=15 // pred_region
          %s192 = sand.u32 %s75, 1
          %s193 = scalar_lea.sflag [#allocation6], %s192
          %s194 = sand.u32 %s75, 1
          %s195 = smul.addr %s194, 128
          %s196 = scalar_lea.vmem [#allocation5], %s195
          %s198 = ssub.s32 2048, 2048
          %199 = vsyncadd %s193, %s198
          %s200 = smul.addr %s27, 128
          %s201 = scalar_lea.hbm %s1, %s200
          %s202 = sshll.u32 %s196, 4
          %s203 = int_to_ptr.vmem [resolvable:$true] %s202
          %208 = dma.hbm_to_vmem [thread:$0]  %s201, 2048, %s203, %s193, 384, 128, 8
        $region24: #{tpu_custom_call.1} parent=15 // pred_fallthru
          _
        // Predicated region
        $region25: #{tpu_custom_call.1} parent=15 // pred_check
          %p209 = pneg %p111
        $region26: #{tpu_custom_call.1} parent=15 // pred_check_branch
          %211 = sbr.rel (%p209) target = $region28
        $region27: #{tpu_custom_call.1} parent=15 // pred_region
          %p212 = scmp.lt.s32.totalorder %s27, 2
          %s213 = scalar_select %p212, %s27, 2
          %s214 = scalar_lea.vmem %s2, %s213
        $region28: #{tpu_custom_call.1} parent=15 // pred_fallthru
          _
      $region16: #{tpu_custom_call.1} parent=5 // pred_fallthru
        _
      %p215 = scmp.le.s32.totalorder 1, %s18
      %p216 = scmp.lt.s32.totalorder %s18, 13
      %p217 = pnand %p215, %p216
      %p218 = pneg %p217
      // Predicated region
      $region29: #{tpu_custom_call.1} parent=5 // pred_check
        _
      $region30: #{tpu_custom_call.1} parent=5 // pred_check_branch
        %220 = sbr.rel (%p217) target = $region32
      $region31: #{tpu_custom_call.1} parent=5 // pred_region
        %s221 = ssub.s32 %s18, 1
        %s222 = sand.u32 %s52, 1
        %s223 = scalar_lea.sflag [#allocation3], %s222
        %s224 = sand.u32 %s52, 1
        %s225 = smul.addr %s224, 16
        %s226 = scalar_lea.vmem [#allocation2], %s225
        // Predicated region
        $region33: #{tpu_custom_call.1} parent=31 // pred_check
          %p227 = pneg %p65
        $region34: #{tpu_custom_call.1} parent=31 // pred_check_branch
          %229 = sbr.rel (%p227) target = $region36
        $region35: #{tpu_custom_call.1} parent=31 // pred_region
          %230 = dma.done %s223, 256
        $region36: #{tpu_custom_call.1} parent=31 // pred_fallthru
          _
        %s231 = sand.u32 %s78, 1
        %s232 = scalar_lea.sflag [#allocation6], %s231
        %s233 = sand.u32 %s78, 1
        %s234 = smul.addr %s233, 128
        %s235 = scalar_lea.vmem [#allocation5], %s234
        // Predicated region
        $region37: #{tpu_custom_call.1} parent=31 // pred_check
          %p236 = pneg %p91
        $region38: #{tpu_custom_call.1} parent=31 // pred_check_branch
          %238 = sbr.rel (%p236) target = $region40
        $region39: #{tpu_custom_call.1} parent=31 // pred_region
          %239 = dma.done %s232, 2048
        $region40: #{tpu_custom_call.1} parent=31 // pred_fallthru
          _
        %s240 = sand.u32 %s52, 1
        %s241 = scalar_lea.sflag [#allocation3], %s240
        %s242 = sand.u32 %s52, 1
        %s243 = smul.addr %s242, 16
        %s244 = scalar_lea.vmem [#allocation2], %s243
        %p245 = pneg %p65
        %p246 = pneg %p62
        %s247 = sand.u32 %s78, 1
        %s248 = scalar_lea.sflag [#allocation6], %s247
        %s249 = sand.u32 %s78, 1
        %s250 = smul.addr %s249, 128
        %s251 = scalar_lea.vmem [#allocation5], %s250
        %p252 = pneg %p91
        %p253 = pneg %p88
        %p254 = scmp.lt.s32.totalorder %s30, 2
        %s255 = scalar_select %p254, %s30, 2
        %s256 = scalar_lea.vmem %s2, %s255
        %p257 = pneg %p117
        %p258 = pneg %p114
        %p259 = pneg %p147
        %p260 = pneg %p144
        %s261 = sand.u32 %s134, 1
        %s262 = scalar_lea.sflag [#allocation4], %s261
        %s263 = sand.u32 %s134, 1
        %s264 = smul.addr %s263, 16
        %s265 = scalar_lea.vmem [#allocation7], %s264
        %s266 = smul.u32 2, %s29
        %p267 = scmp.lt.s32.totalorder %s30, 2
        %s268 = scalar_select %p267, %s30, 2
        %s269 = scalar_lea.vmem %s2, %s268
        %s270 = smul.u32 2, %s29
        %v271 = vld [vmem:[%s226] sm:$0xff]
        %v272 = vld [vmem:[%s226 + $0x8] sm:$0xff]
        %v273 = vld [vmem:[%s235] sm:$0xff]
        %v274 = vld [vmem:[%s235 + $0x8] sm:$0xff]
        %v275 = vld [vmem:[%s235 + $0x10] sm:$0xff]
        %v276 = vld [vmem:[%s235 + $0x18] sm:$0xff]
        %v277 = vld [vmem:[%s235 + $0x20] sm:$0xff]
        %v278 = vld [vmem:[%s235 + $0x28] sm:$0xff]
        %v279 = vld [vmem:[%s235 + $0x30] sm:$0xff]
        %v280 = vld [vmem:[%s235 + $0x38] sm:$0xff]
        %v281 = vld [vmem:[%s235 + $0x40] sm:$0xff]
        %v282 = vld [vmem:[%s235 + $0x48] sm:$0xff]
        %v283 = vld [vmem:[%s235 + $0x50] sm:$0xff]
        %v284 = vld [vmem:[%s235 + $0x58] sm:$0xff]
        %v285 = vld [vmem:[%s235 + $0x60] sm:$0xff]
        %v286 = vld [vmem:[%s235 + $0x68] sm:$0xff]
        %v287 = vld [vmem:[%s235 + $0x70] sm:$0xff]
        %v288 = vld [vmem:[%s235 + $0x78] sm:$0xff]
        %v289 = vld [vmem:[%s269] sm:$0x1]
        %v291 = vlaneseq
        %v292 = vshrl.u32 %v291, 7
        %v293 = vsub.s32 0, %v292
        %v294 = vrot.slane %v289, %v293
        %296 = vmatprep.subr.mxu0 0.0
        %297 = vmatpush1.msra.mxu0 %v288
        %298 = vmatprep.subr.mxu0 0.0
        %299 = vmatpush1.msra.mxu0 %v287
        %300 = vmatprep.subr.mxu0 0.0
        %301 = vmatpush1.msra.mxu0 %v286
        %302 = vmatprep.subr.mxu0 0.0
        %303 = vmatpush1.msra.mxu0 %v285
        %304 = vmatprep.subr.mxu0 0.0
        %305 = vmatpush1.msra.mxu0 %v284
        %306 = vmatprep.subr.mxu0 0.0
        %307 = vmatpush1.msra.mxu0 %v283
        %308 = vmatprep.subr.mxu0 0.0
        %309 = vmatpush1.msra.mxu0 %v282
        %310 = vmatprep.subr.mxu0 0.0
        %311 = vmatpush1.msra.mxu0 %v281
        %312 = vmatprep.subr.mxu0 0.0
        %313 = vmatpush1.msra.mxu0 %v280
        %314 = vmatprep.subr.mxu0 0.0
        %315 = vmatpush1.msra.mxu0 %v279
        %316 = vmatprep.subr.mxu0 0.0
        %317 = vmatpush1.msra.mxu0 %v278
        %318 = vmatprep.subr.mxu0 0.0
        %319 = vmatpush1.msra.mxu0 %v277
        %320 = vmatprep.subr.mxu0 0.0
        %321 = vmatpush1.msra.mxu0 %v276
        %322 = vmatprep.subr.mxu0 0.0
        %323 = vmatpush1.msra.mxu0 %v275
        %324 = vmatprep.subr.mxu0 0.0
        %325 = vmatpush1.msra.mxu0 %v274
        %326 = vmatprep.subr.mxu0 0.0
        %327 = vmatpush1.msra.mxu0 %v273
        %328 = vmatprep.subr.mxu0 0.0
        %329 = vmatpush2.msra.mxu0 0.0
        %330 = vmatprep.subr.mxu0 0.0
        %331 = vmatpush2.msra.mxu0 0.0
        %332 = vmatprep.subr.mxu0 0.0
        %333 = vmatpush2.msra.mxu0 0.0
        %334 = vmatprep.subr.mxu0 0.0
        %335 = vmatpush2.msra.mxu0 0.0
        %336 = vmatprep.subr.mxu0 0.0
        %337 = vmatpush2.msra.mxu0 0.0
        %338 = vmatprep.subr.mxu0 0.0
        %339 = vmatpush2.msra.mxu0 0.0
        %340 = vmatprep.subr.mxu0 0.0
        %341 = vmatpush2.msra.mxu0 0.0
        %342 = vmatprep.subr.mxu0 0.0
        %343 = vmatpush2.msra.mxu0 0.0
        %344 = vmatprep.subr.mxu0 0.0
        %345 = vmatpush2.msra.mxu0 0.0
        %346 = vmatprep.subr.mxu0 0.0
        %347 = vmatpush2.msra.mxu0 0.0
        %348 = vmatprep.subr.mxu0 0.0
        %349 = vmatpush2.msra.mxu0 0.0
        %350 = vmatprep.subr.mxu0 0.0
        %351 = vmatpush2.msra.mxu0 0.0
        %352 = vmatprep.subr.mxu0 0.0
        %353 = vmatpush2.msra.mxu0 0.0
        %354 = vmatprep.subr.mxu0 0.0
        %355 = vmatpush2.msra.mxu0 0.0
        %356 = vmatprep.subr.mxu0 0.0
        %357 = vmatpush2.msra.mxu0 0.0
        %358 = vmatprep.subr.mxu0 0.0
        %359 = vmatpush2.msra.mxu0 0.0
        %360 = vmatprep.mubr.f32.mxu0 0.0
        %361 = vmatmul.mubr.f32.gmra.mxu0 %v271
        %v362 = vpop.f32.mrf.mxu0
        %v363 = vadd.f32 %v294, %v362
        %v364 = vpop.f32.mrf.mxu0
        %365 = vmatprep.mubr.f32.mxu0 0.0
        %366 = vmatmul.mubr.f32.gmra.mxu0 %v272
        %v367 = vpop.f32.mrf.mxu0
        %v368 = vadd.f32 %v294, %v367
        %v369 = vpop.f32.mrf.mxu0
        %370 = vdwg.mxu0
        %371 = vst [vmem:[%s265] sm:$0xff] %v363
        %372 = vst [vmem:[%s265 + $0x8] sm:$0xff] %v368
        %s373 = sand.u32 %s134, 1
        %s374 = scalar_lea.sflag [#allocation4], %s373
        %s375 = sand.u32 %s134, 1
        %s376 = smul.addr %s375, 16
        %s377 = scalar_lea.vmem [#allocation7], %s376
        // Predicated region
        $region41: #{tpu_custom_call.1} parent=31 // pred_check
          %p378 = pneg %p144
        $region42: #{tpu_custom_call.1} parent=31 // pred_check_branch
          %380 = sbr.rel (%p378) target = $region44
        $region43: #{tpu_custom_call.1} parent=31 // pred_region
          %s381 = smul.u32 2, %s29
          %s383 = ssub.s32 256, 256
          %384 = vsyncadd %s374, %s383
          %s385 = smul.addr %s381, 3
          %s386 = sadd.s32 %s30, %s385
          %s387 = smul.addr %s28, 12
          %s388 = sadd.s32 %s386, %s387
          %s389 = smul.addr %s388, 128
          %s390 = scalar_lea.hbm %s3, %s389
          %s391 = sshll.u32 %s377, 4
          %s392 = int_to_ptr.vmem [resolvable:$true] %s391
          %397 = dma.vmem_to_hbm [thread:$0]  %s392, 256, %s390, %s374, 128, 384, 8
        $region44: #{tpu_custom_call.1} parent=31 // pred_fallthru
          _
      $region32: #{tpu_custom_call.1} parent=5 // pred_fallthru
        _
      %p398 = scmp.le.s32.totalorder 2, %s18
      // Predicated region
      $region45: #{tpu_custom_call.1} parent=5 // pred_check
        %p399 = pneg %p398
      $region46: #{tpu_custom_call.1} parent=5 // pred_check_branch
        %401 = sbr.rel (%p399) target = $region48
      $region47: #{tpu_custom_call.1} parent=5 // pred_region
        %s402 = ssub.s32 %s18, 2
        // Predicated region
        $region49: #{tpu_custom_call.1} parent=47 // pred_check
          %p403 = pneg %p150
        $region50: #{tpu_custom_call.1} parent=47 // pred_check_branch
          %405 = sbr.rel (%p403) target = $region52
        $region51: #{tpu_custom_call.1} parent=47 // pred_region
          %s406 = sand.u32 %s135, 1
          %s407 = scalar_lea.sflag [#allocation4], %s406
          %s408 = sand.u32 %s135, 1
          %s409 = smul.addr %s408, 16
          %s410 = scalar_lea.vmem [#allocation7], %s409
          %411 = dma.done %s407, 256
        $region52: #{tpu_custom_call.1} parent=47 // pred_fallthru
          _
      $region48: #{tpu_custom_call.1} parent=5 // pred_fallthru
        _
    $region6: #{tpu_custom_call.1} parent=1 // loop_footer
      %s22 = sadd.s32 1, %s18
    $region7: #{tpu_custom_call.1} parent=1 // loop_footer_branch
      %17 = sbr.rel target = $region3
    $region8: #{tpu_custom_call.1} parent=1 // loop_exit
      _
    %412 = vsyncpa [#allocation3], 1
    %s413 = scalar_lea.sflag [#allocation3], 1
    %414 = vsyncpa %s413, 1
    %415 = vsyncpa [#allocation6], 1
    %s416 = scalar_lea.sflag [#allocation6], 1
    %417 = vsyncpa %s416, 1
    %418 = vsyncpa [#allocation4], 1
    %s419 = scalar_lea.sflag [#allocation4], 1
    %420 = vsyncpa %s419, 1

</llo_original>
